<compile_context>
chip_gen: v7x
topology: tpu7x:2x2x1
jax: 0.10.0
libtpu: 0.0.40
codegen_flags: <defaults>
</compile_context>

<pallas_src>
import jax
import jax.numpy as jnp
from jax.experimental import pallas as pl
from jax.experimental.pallas import tpu as pltpu


def _round_up(x, m):
    return ((x + m - 1) // m) * m


# ----------------------- layer 1: h = relu(A_hat @ (x @ W1) + b1) -----------------------
def gcn_layer1_kernel(a_ref, x_ref, w1_ref, b1_ref, h_ref, acc_ref):
    k = pl.program_id(1)

    @pl.when(k == 0)
    def _():
        acc_ref[...] = jnp.zeros_like(acc_ref)

    # Feature transform for this K-chunk of nodes: (tk, F) @ (F, H). O(tk*F*H) -- tiny
    # next to the (tm, tk) A tile, so recomputing it per row tile is negligible.
    xw = jnp.dot(x_ref[...].astype(jnp.bfloat16),
                 w1_ref[...].astype(jnp.bfloat16),
                 preferred_element_type=jnp.float32)
    # Aggregation: bf16 MXU operands, f32 accumulation in VMEM scratch.
    acc_ref[...] += jnp.dot(a_ref[...], xw.astype(jnp.bfloat16),
                            preferred_element_type=jnp.float32)

    @pl.when(k == pl.num_programs(1) - 1)
    def _():
        h = acc_ref[...] + b1_ref[...]          # f32 bias add
        h_ref[...] = jnp.maximum(h, 0.0)        # f32 ReLU
        # TODO(synk): training-mode dropout (pltpu.prng_random_bits mask) not implemented;
        # eval mode -> identity, matching F.dropout(x, training=False).


# ------------------- layer 2: out = sigmoid(A_hat @ (h @ W2_pad) + b2) ------------------
def gcn_layer2_kernel(a_ref, h_ref, w2_ref, b2_ref, o_ref, acc_ref):
    k = pl.program_id(1)

    @pl.when(k == 0)
    def _():
        acc_ref[...] = jnp.zeros_like(acc_ref)

    # (tk, H) @ (H, 128): only column 0 of W2_pad is real; padding keeps stores lane-dense.
    hw = jnp.dot(h_ref[...].astype(jnp.bfloat16), w2_ref[...],
                 preferred_element_type=jnp.float32)
    acc_ref[...] += jnp.dot(a_ref[...], hw.astype(jnp.bfloat16),
                            preferred_element_type=jnp.float32)

    @pl.when(k == pl.num_programs(1) - 1)
    def _():
        o_ref[...] = jax.nn.sigmoid(acc_ref[...] + b2_ref[0])   # f32 sigmoid


def node_gcn_forward(a_hat, x, w1, b1, w2, b2, *, tile=256):
    """Full NodeGCN forward. a_hat: (N, N) f32 normalized adjacency; returns (N, 1) f32."""
    n, f = x.shape
    hidden = w1.shape[1]

    n_pad = _round_up(n, tile)
    tm = tk = tile
    grid = (n_pad // tm, n_pad // tk)

    # Pad to a tile multiple; padded A rows/cols are zero, so real-node outputs are exact.
    a_p = jnp.zeros((n_pad, n_pad), jnp.float32).at[:n, :n].set(a_hat)
    x_p = jnp.zeros((n_pad, f), jnp.float32).at[:n, :].set(x)
    a_bf16 = a_p.astype(jnp.bfloat16)           # bf16 adjacency in HBM: halves DMA bytes

    compiler_params = pltpu.CompilerParams(
        dimension_semantics=("parallel", "arbitrary"),  # rows parallel, K-reduction last
        vmem_limit_bytes=32 * 1024 * 1024,              # explicit (safe on v5e/v6e/v7x)
    )

    # ---------------------------------- layer 1 ----------------------------------
    h = pl.pallas_call(
        gcn_layer1_kernel,
        out_shape=jax.ShapeDtypeStruct((n_pad, hidden), jnp.float32),
        grid_spec=pltpu.PrefetchScalarGridSpec(
            num_scalar_prefetch=0,
            grid=grid,
            in_specs=[
                pl.BlockSpec((tm, tk), lambda i, k: (i, k)),        # A tile (bf16)
                pl.BlockSpec((tk, f), lambda i, k: (k, 0)),         # x K-chunk
                pl.BlockSpec((f, hidden), lambda i, k: (0, 0)),     # W1 (resident)
                pl.BlockSpec((1, hidden), lambda i, k: (0, 0)),     # b1 (resident)
            ],
            out_specs=pl.BlockSpec((tm, hidden), lambda i, k: (i, 0)),
            scratch_shapes=[pltpu.VMEM((tm, hidden), jnp.float32)],
        ),
        compiler_params=compiler_params,
    )(a_bf16, x_p, w1, b1)

    # ---------------------------------- layer 2 ----------------------------------
    # Lane-dense output trick: pad W2 (H,1) -> (H,128); slice column 0 in the wrapper.
    w2_pad = jnp.zeros((hidden, 128), jnp.float32).at[:, :1].set(w2).astype(jnp.bfloat16)
    b2_s = jnp.reshape(b2, (-1,))[:1].astype(jnp.float32)           # (1,) scalar for SMEM

    out_pad = pl.pallas_call(
        gcn_layer2_kernel,
        out_shape=jax.ShapeDtypeStruct((n_pad, 128), jnp.float32),
        grid_spec=pltpu.PrefetchScalarGridSpec(
            num_scalar_prefetch=0,
            grid=grid,
            in_specs=[
                pl.BlockSpec((tm, tk), lambda i, k: (i, k)),        # A tile (bf16)
                pl.BlockSpec((tk, hidden), lambda i, k: (k, 0)),    # h K-chunk
                pl.BlockSpec((hidden, 128), lambda i, k: (0, 0)),   # W2 padded (resident)
                pl.BlockSpec((1,), lambda i, k: (0,),
                             memory_space=pltpu.MemorySpace.SMEM),  # b2 scalar in SMEM
            ],
            out_specs=pl.BlockSpec((tm, 128), lambda i, k: (i, 0)),
            scratch_shapes=[pltpu.VMEM((tm, 128), jnp.float32)],
        ),
        compiler_params=compiler_params,
    )(a_bf16, h, w2_pad, b2_s)

    return out_pad[:n, :1]


def build_normalized_adjacency(edge_index, num_nodes):
    """Dense A_hat = D^{-1/2} (A + I) D^{-1/2}, matching PyG GCNConv normalization."""
    src = edge_index[0]
    dst = edge_index[1]
    a = jnp.zeros((num_nodes, num_nodes), jnp.float32)
    a = a.at[dst, src].add(1.0)                     # A[dst, src] = 1
    a = a + jnp.eye(num_nodes, dtype=jnp.float32)   # self loops
    deg = a.sum(axis=1)
    dinv = jnp.where(deg > 0, 1.0 / jnp.sqrt(deg), 0.0)
    return dinv[:, None] * a * dinv[None, :]


def init_params(key, num_node_features, hidden_dim=16):
    """Deterministic glorot-uniform weights, zero bias (PyG GCNConv init scheme)."""
    k1, k2 = jax.random.split(key)

    def glorot(k, fan_in, fan_out):
        lim = jnp.sqrt(6.0 / (fan_in + fan_out))
        return jax.random.uniform(k, (fan_in, fan_out), jnp.float32, -lim, lim)

    w1 = glorot(k1, num_node_features, hidden_dim)
    b1 = jnp.zeros((1, hidden_dim), jnp.float32)
    w2 = glorot(k2, hidden_dim, 1)
    b2 = jnp.zeros((1, 1), jnp.float32)
    return w1, b1, w2, b2


def reference_forward(a_hat, x, w1, b1, w2, b2):
    h = a_hat @ (x @ w1) + b1
    h = jnp.maximum(h, 0.0)
    out = a_hat @ (h @ w2) + b2
    return jax.nn.sigmoid(out)


if __name__ == "__main__":
    key = jax.random.PRNGKey(0)
    k_x, k_p = jax.random.split(key)

    num_nodes = 512          # small, but large enough to exercise a real 2x2 tile grid
    num_node_features = 8
    hidden_dim = 16

    # node features
    x = jax.random.normal(k_x, (num_nodes, num_node_features), jnp.float32)

    # simple bidirectional ring graph: edge_index shape (2, 2*N)
    idx = jnp.arange(num_nodes, dtype=jnp.int32)
    nxt = (idx + 1) % num_nodes
    src = jnp.concatenate([idx, nxt])
    dst = jnp.concatenate([nxt, idx])
    edge_index = jnp.stack([src, dst])

    a_hat = build_normalized_adjacency(edge_index, num_nodes)
    w1, b1, w2, b2 = init_params(k_p, num_node_features, hidden_dim)

    out = node_gcn_forward(a_hat, x, w1, b1, w2, b2, tile=256)
    out = jax.block_until_ready(out)

    ref = reference_forward(a_hat, x, w1, b1, w2, b2)
    assert out.shape == (num_nodes, 1)
    # bf16 adjacency / MXU operands (f32 accumulation) -> loosened tolerance vs f32 ref.
    assert jnp.allclose(out, ref, atol=2e-2, rtol=2e-2), float(jnp.max(jnp.abs(out - ref)))

    print("KERNEL_OK")
</pallas_src>

<mosaic_0001>
module attributes {stable_mosaic.version = 11 : i64} {
  func.func @gcn_layer1_kernel(%arg0: i32, %arg1: i32, %arg2: memref<256x256xbf16, #tpu.memory_space<vmem>>, %arg3: memref<256x8xf32, #tpu.memory_space<vmem>>, %arg4: memref<8x16xf32, #tpu.memory_space<vmem>>, %arg5: memref<1x16xf32, #tpu.memory_space<vmem>>, %arg6: memref<256x16xf32, #tpu.memory_space<vmem>>, %arg7: memref<256x16xf32, #tpu.memory_space<vmem>>) attributes {dimension_semantics = [#tpu.dimension_semantics<parallel>, #tpu.dimension_semantics<arbitrary>], iteration_bounds = array<i64: 2, 2>, scalar_prefetch = 0 : i64, scratch_operands = 1 : i64, tpu.core_type = #tpu.core_type<tc>, window_params = [{transform_indices = @transform_0, window_bounds = array<i64: 256, 256>}, {transform_indices = @transform_1, window_bounds = array<i64: 256, 8>}, {pipeline_mode = #tpu.pipeline_mode<synchronous>, transform_indices = @transform_2, window_bounds = array<i64: 8, 16>}, {pipeline_mode = #tpu.pipeline_mode<synchronous>, transform_indices = @transform_3, window_bounds = array<i64: 1, 16>}, {transform_indices = @transform_4, window_bounds = array<i64: 256, 16>}]} {
    %c0_i32 = arith.constant 0 : i32
    %0 = arith.cmpi eq, %arg1, %c0_i32 : i32
    %1 = arith.extui %0 : i1 to i32
    %c0_i32_0 = arith.constant 0 : i32
    %2 = arith.cmpi ne, %1, %c0_i32_0 : i32
    scf.if %2 {
      %cst_12 = arith.constant 0.000000e+00 : f32
      %17 = vector.broadcast %cst_12 : f32 to vector<256x16xf32>
      %c0_13 = arith.constant 0 : index
      %c0_14 = arith.constant 0 : index
      %18 = vector.load %arg7[%c0_13, %c0_14] : memref<256x16xf32, #tpu.memory_space<vmem>>, vector<256x16xf32>
      tpu.vector_store %arg7[%c0_13, %c0_14], %17 {strides = array<i32>} : memref<256x16xf32, #tpu.memory_space<vmem>>, vector<256x16xf32>,
    } else {
    }
    %c0 = arith.constant 0 : index
    %c0_1 = arith.constant 0 : index
    %3 = vector.load %arg3[%c0, %c0_1] : memref<256x8xf32, #tpu.memory_space<vmem>>, vector<256x8xf32>
    %4 = arith.truncf %3 : vector<256x8xf32> to vector<256x8xbf16>
    %c0_2 = arith.constant 0 : index
    %c0_3 = arith.constant 0 : index
    %5 = vector.load %arg4[%c0_2, %c0_3] : memref<8x16xf32, #tpu.memory_space<vmem>>, vector<8x16xf32>
    %6 = arith.truncf %5 : vector<8x16xf32> to vector<8x16xbf16>
    %cst = arith.constant dense<0.000000e+00> : vector<256x16xf32>
    %7 = tpu.matmul %4, %6, %cst {dimension_numbers = #tpu.dot_dimension_numbers<[1], [0], [0], [1], [0, 0, 1, 1], [], []>} : vector<256x8xbf16>, vector<8x16xbf16>, vector<256x16xf32> -> vector<256x16xf32>
    %c0_4 = arith.constant 0 : index
    %c0_5 = arith.constant 0 : index
    %8 = vector.load %arg7[%c0_4, %c0_5] : memref<256x16xf32, #tpu.memory_space<vmem>>, vector<256x16xf32>
    %c0_6 = arith.constant 0 : index
    %c0_7 = arith.constant 0 : index
    %9 = vector.load %arg2[%c0_6, %c0_7] : memref<256x256xbf16, #tpu.memory_space<vmem>>, vector<256x256xbf16>
    %10 = arith.truncf %7 : vector<256x16xf32> to vector<256x16xbf16>
    %cst_8 = arith.constant dense<0.000000e+00> : vector<256x16xf32>
    %11 = tpu.matmul %9, %10, %cst_8 {dimension_numbers = #tpu.dot_dimension_numbers<[1], [0], [0], [1], [0, 0, 1, 1], [], []>} : vector<256x256xbf16>, vector<256x16xbf16>, vector<256x16xf32> -> vector<256x16xf32>
    %12 = arith.addf %8, %11 : vector<256x16xf32>
    %c0_9 = arith.constant 0 : index
    %c0_10 = arith.constant 0 : index
    %13 = vector.load %arg7[%c0_9, %c0_10] : memref<256x16xf32, #tpu.memory_space<vmem>>, vector<256x16xf32>
    tpu.vector_store %arg7[%c0_9, %c0_10], %12 {strides = array<i32>} : memref<256x16xf32, #tpu.memory_space<vmem>>, vector<256x16xf32>,
    %c1_i32 = arith.constant 1 : i32
    %14 = arith.cmpi eq, %arg1, %c1_i32 : i32
    %15 = arith.extui %14 : i1 to i32
    %c0_i32_11 = arith.constant 0 : i32
    %16 = arith.cmpi ne, %15, %c0_i32_11 : i32
    scf.if %16 {
      %c0_12 = arith.constant 0 : index
      %c0_13 = arith.constant 0 : index
      %17 = vector.load %arg7[%c0_12, %c0_13] : memref<256x16xf32, #tpu.memory_space<vmem>>, vector<256x16xf32>
      %c0_14 = arith.constant 0 : index
      %c0_15 = arith.constant 0 : index
      %18 = vector.load %arg5[%c0_14, %c0_15] : memref<1x16xf32, #tpu.memory_space<vmem>>, vector<1x16xf32>
      %19 = vector.broadcast %18 : vector<1x16xf32> to vector<256x16xf32>
      %20 = arith.addf %17, %19 : vector<256x16xf32>
      %cst_16 = arith.constant 0.000000e+00 : f32
      %21 = vector.broadcast %cst_16 : f32 to vector<256x16xf32>
      %22 = arith.maximumf %20, %21 : vector<256x16xf32>
      %c0_17 = arith.constant 0 : index
      %c0_18 = arith.constant 0 : index
      %23 = vector.load %arg6[%c0_17, %c0_18] : memref<256x16xf32, #tpu.memory_space<vmem>>, vector<256x16xf32>
      tpu.vector_store %arg6[%c0_17, %c0_18], %22 {strides = array<i32>} : memref<256x16xf32, #tpu.memory_space<vmem>>, vector<256x16xf32>,
    } else {
    }
    return
  }
  func.func @transform_0(%arg0: i32, %arg1: i32) -> (i32, i32) {
    %c0_i32 = arith.constant 0 : i32
    return %arg0, %arg1 : i32, i32
  }
  func.func @transform_1(%arg0: i32, %arg1: i32) -> (i32, i32) {
    %c0_i32 = arith.constant 0 : i32
    %c0_i32_0 = arith.constant 0 : i32
    return %arg1, %c0_i32 : i32, i32
  }
  func.func @transform_2(%arg0: i32, %arg1: i32) -> (i32, i32) {
    %c0_i32 = arith.constant 0 : i32
    %c0_i32_0 = arith.constant 0 : i32
    %c0_i32_1 = arith.constant 0 : i32
    return %c0_i32, %c0_i32_0 : i32, i32
  }
  func.func @transform_3(%arg0: i32, %arg1: i32) -> (i32, i32) {
    %c0_i32 = arith.constant 0 : i32
    %c0_i32_0 = arith.constant 0 : i32
    %c0_i32_1 = arith.constant 0 : i32
    return %c0_i32, %c0_i32_0 : i32, i32
  }
  func.func @transform_4(%arg0: i32, %arg1: i32) -> (i32, i32) {
    %c0_i32 = arith.constant 0 : i32
    %c0_i32_0 = arith.constant 0 : i32
    return %arg0, %c0_i32 : i32, i32
  }
}

</mosaic_0001>

<llo_original>
// kernel: tpu_custom_call.1
$region0: #{tpu_custom_call.1}
  #allocation0 [shape = 'u32[]', space=smem, size = 0x4, offset = 0x4, fixed_abs, tag = 'smem constant byte address 0x4 - core index']
  #allocation1 [shape = 'u32[144,128]{1,0:T(1,128)}', space=vmem, size = 0x12000, scoped, tag = 'internal scratch']
  #allocation2 [shape = 'f32[256,16]{1,0:T(8,128)}', space=vmem, size = 0x20000, scoped, tag = 'scratch operand']
  %s0 = inlined_call_operand.hbm [shape: bf16[512,512], index: 0, kind: input, shape index: {}]
  %s1 = inlined_call_operand.vmem [shape: f32[512,8], index: 1, kind: input, shape index: {}]
  %s2 = inlined_call_operand.vmem [shape: f32[8,16], index: 2, kind: input, shape index: {}]
  %s3 = inlined_call_operand.vmem [shape: f32[1,16], index: 3, kind: input, shape index: {}]
  %s4 = inlined_call_operand.vmem [shape: f32[512,16], index: 4, kind: output, shape index: {}]
  %s5 = sld [smem:[#allocation0]]
  $region61: #{tpu_custom_call.1} parent=0
    _
  %s7 = ssub.s32 1, %s5
  %s8 = scalar_select 0, %s7, %s5
  $region1: #{tpu_custom_call.1} parent=0
    #allocation3 [shape = 'u8[262144]{0}', space=vmem, size = 0x40000, scoped, tag = 'input window, operand 0']
    #allocation4 [shape = 's32[2]{0}', space=sflag, size = 0x8, scoped, tag = 'scoped memory for tpu_custom_call.1']
    %9 = vsyncpa [#allocation4], 0
    %s10 = scalar_lea.sflag [#allocation4], 1
    %11 = vsyncpa %s10, 0
    loop: start=0, step=1, limit=6
    $region2: #{tpu_custom_call.1} parent=1 // loop_pre_header
      _
    $region3: #{tpu_custom_call.1} parent=1 // loop_header
      %s13 = sphi 0, %s17
      %p14 = scmp.ge.s32.totalorder %s13, 6
      %s20 = sphi 0, %s32
      %s21 = sphi 0, %s28
      %s22 = sphi 0, %s20
      %s23 = sphi 0, %s21
      %s24 = sphi 0, %s22
      %s25 = sphi 0, %s23
      %s37 = sphi 0, %s39
      %s40 = sphi 0, %s37
      %s41 = sphi 0, %s40
      %s57 = sphi 0, %s41
      %s63 = sphi 0, %s65
      %s66 = sphi 0, %s63
      %s67 = sphi 0, %s66
      %s83 = sphi 0, %s67
      %s87 = sphi 0, %s87
      %s89 = sphi 0, %s87
      %s90 = sphi 0, %s89
      %s104 = sphi 0, %s90
      %s108 = sphi 0, %s108
      %s110 = sphi 0, %s108
      %s111 = sphi 0, %s110
      %s125 = sphi 0, %s111
      %s131 = sphi 0, %s133
      %s134 = sphi 0, %s131
      %s135 = sphi 0, %s134
      %s151 = sphi 0, %s135
    $region4: #{tpu_custom_call.1} parent=1 // loop_header_branch
      %16 = sbr.rel (%p14) target = $region8
    $region5: #{tpu_custom_call.1} parent=1 // loop_body
      %s18 = ssub.s32 %s13, 1
      %s19 = ssub.s32 %s13, 2
      %s26 = sadd.s32 1, %s21
      %p27 = scmp.ge.s32.totalorder %s26, 2
      %s28 = scalar_select %p27, 0, %s26
      %s29 = sadd.s32 1, %s20
      %s30 = scalar_select %p27, %s29, %s20
      %p31 = scmp.ge.s32.totalorder %s30, 2
      %s32 = scalar_select %p31, 0, %s30
      %s33 = ssub.s32 %s20, %s32
      %s34 = ssub.s32 %s21, %s28
      %s35 = sor.u32 %s33, %s34
      %p36 = scmp.eq.s32.totalorder %s35, 0
      %s38 = sadd.s32 %s37, 1
      %s39 = scalar_select %p36, %s37, %s38
      %p42 = pneg %p36
      %p43 = scmp.eq.s32.totalorder %s13, 3
      %p44 = por %p42, %p43
      %p45 = scmp.ne.s32.totalorder %s37, %s40
      %p46 = scmp.eq.s32.totalorder %s13, 0
      %p47 = por %p45, %p46
      %p48 = scmp.ne.s32.totalorder %s37, %s40
      %p49 = scmp.eq.s32.totalorder %s18, 3
      %p50 = por %p48, %p49
      %p51 = scmp.ne.s32.totalorder %s40, %s41
      %p52 = scmp.eq.s32.totalorder %s18, 0
      %p53 = por %p51, %p52
      %p54 = scmp.ne.s32.totalorder %s40, %s41
      %p55 = scmp.eq.s32.totalorder %s19, 3
      %p56 = por %p54, %p55
      %p58 = scmp.ne.s32.totalorder %s41, %s57
      %p59 = scmp.eq.s32.totalorder %s19, 0
      %p60 = por %p58, %p59
      %s61 = ssub.s32 %s21, %s28
      %p62 = scmp.eq.s32.totalorder %s61, 0
      %s64 = sadd.s32 %s63, 1
      %s65 = scalar_select %p62, %s63, %s64
      %p68 = pneg %p62
      %p69 = scmp.eq.s32.totalorder %s13, 3
      %p70 = por %p68, %p69
      %p71 = scmp.ne.s32.totalorder %s63, %s66
      %p72 = scmp.eq.s32.totalorder %s13, 0
      %p73 = por %p71, %p72
      %p74 = scmp.ne.s32.totalorder %s63, %s66
      %p75 = scmp.eq.s32.totalorder %s18, 3
      %p76 = por %p74, %p75
      %p77 = scmp.ne.s32.totalorder %s66, %s67
      %p78 = scmp.eq.s32.totalorder %s18, 0
      %p79 = por %p77, %p78
      %p80 = scmp.ne.s32.totalorder %s66, %s67
      %p81 = scmp.eq.s32.totalorder %s19, 3
      %p82 = por %p80, %p81
      %p84 = scmp.ne.s32.totalorder %s67, %s83
      %p85 = scmp.eq.s32.totalorder %s19, 0
      %p86 = por %p84, %p85
      %s88 = sadd.s32 %s87, 1
      %p91 = scmp.eq.s32.totalorder %s13, 3
      %p92 = scmp.ne.s32.totalorder %s87, %s89
      %p93 = scmp.eq.s32.totalorder %s13, 0
      %p94 = por %p92, %p93
      %p95 = scmp.ne.s32.totalorder %s87, %s89
      %p96 = scmp.eq.s32.totalorder %s18, 3
      %p97 = por %p95, %p96
      %p98 = scmp.ne.s32.totalorder %s89, %s90
      %p99 = scmp.eq.s32.totalorder %s18, 0
      %p100 = por %p98, %p99
      %p101 = scmp.ne.s32.totalorder %s89, %s90
      %p102 = scmp.eq.s32.totalorder %s19, 3
      %p103 = por %p101, %p102
      %p105 = scmp.ne.s32.totalorder %s90, %s104
      %p106 = scmp.eq.s32.totalorder %s19, 0
      %p107 = por %p105, %p106
      %s109 = sadd.s32 %s108, 1
      %p112 = scmp.eq.s32.totalorder %s13, 3
      %p113 = scmp.ne.s32.totalorder %s108, %s110
      %p114 = scmp.eq.s32.totalorder %s13, 0
      %p115 = por %p113, %p114
      %p116 = scmp.ne.s32.totalorder %s108, %s110
      %p117 = scmp.eq.s32.totalorder %s18, 3
      %p118 = por %p116, %p117
      %p119 = scmp.ne.s32.totalorder %s110, %s111
      %p120 = scmp.eq.s32.totalorder %s18, 0
      %p121 = por %p119, %p120
      %p122 = scmp.ne.s32.totalorder %s110, %s111
      %p123 = scmp.eq.s32.totalorder %s19, 3
      %p124 = por %p122, %p123
      %p126 = scmp.ne.s32.totalorder %s111, %s125
      %p127 = scmp.eq.s32.totalorder %s19, 0
      %p128 = por %p126, %p127
      %s129 = ssub.s32 %s20, %s32
      %p130 = scmp.eq.s32.totalorder %s129, 0
      %s132 = sadd.s32 %s131, 1
      %s133 = scalar_select %p130, %s131, %s132
      %p136 = pneg %p130
      %p137 = scmp.eq.s32.totalorder %s13, 3
      %p138 = por %p136, %p137
      %p139 = scmp.ne.s32.totalorder %s131, %s134
      %p140 = scmp.eq.s32.totalorder %s13, 0
      %p141 = por %p139, %p140
      %p142 = scmp.ne.s32.totalorder %s131, %s134
      %p143 = scmp.eq.s32.totalorder %s18, 3
      %p144 = por %p142, %p143
      %p145 = scmp.ne.s32.totalorder %s134, %s135
      %p146 = scmp.eq.s32.totalorder %s18, 0
      %p147 = por %p145, %p146
      %p148 = scmp.ne.s32.totalorder %s134, %s135
      %p149 = scmp.eq.s32.totalorder %s19, 3
      %p150 = por %p148, %p149
      %p152 = scmp.ne.s32.totalorder %s135, %s151
      %p153 = scmp.eq.s32.totalorder %s19, 0
      %p154 = por %p152, %p153
      %p155 = scmp.le.s32.totalorder 1, %s13
      %p156 = scmp.lt.s32.totalorder %s13, 5
      %p157 = pnand %p155, %p156
      %p158 = pneg %p157
      // Predicated region
      $region9: #{tpu_custom_call.1} parent=5 // pred_check
        _
      $region10: #{tpu_custom_call.1} parent=5 // pred_check_branch
        %160 = sbr.rel (%p157) target = $region12
      $region11: #{tpu_custom_call.1} parent=5 // pred_region
        %s161 = ssub.s32 %s13, 1
        // Predicated region
        $region13: #{tpu_custom_call.1} parent=11 // pred_check
          %p162 = pneg %p100
        $region14: #{tpu_custom_call.1} parent=11 // pred_check_branch
          %164 = sbr.rel (%p162) target = $region16
        $region15: #{tpu_custom_call.1} parent=11 // pred_region
          _
        $region16: #{tpu_custom_call.1} parent=11 // pred_fallthru
          _
        // Predicated region
        $region17: #{tpu_custom_call.1} parent=11 // pred_check
          %p165 = pneg %p121
        $region18: #{tpu_custom_call.1} parent=11 // pred_check_branch
          %167 = sbr.rel (%p165) target = $region20
        $region19: #{tpu_custom_call.1} parent=11 // pred_region
          _
        $region20: #{tpu_custom_call.1} parent=11 // pred_fallthru
          _
      $region12: #{tpu_custom_call.1} parent=5 // pred_fallthru
        _
      %p168 = scmp.lt.s32.totalorder %s13, 4
      // Predicated region
      $region21: #{tpu_custom_call.1} parent=5 // pred_check
        %p169 = pneg %p168
      $region22: #{tpu_custom_call.1} parent=5 // pred_check_branch
        %171 = sbr.rel (%p169) target = $region24
      $region23: #{tpu_custom_call.1} parent=5 // pred_region
        // Predicated region
        $region25: #{tpu_custom_call.1} parent=23 // pred_check
          %p172 = pneg %p47
        $region26: #{tpu_custom_call.1} parent=23 // pred_check_branch
          %174 = sbr.rel (%p172) target = $region28
        $region27: #{tpu_custom_call.1} parent=23 // pred_region
          %s175 = sand.u32 %s37, 1
          %s176 = scalar_lea.sflag [#allocation4], %s175
          %s177 = sand.u32 %s37, 1
          %s178 = smul.addr %s177, 256
          %s179 = scalar_lea.vmem [#allocation3], %s178
          %s180 = smul.u32 32, %s20
          %s181 = smul.u32 2, %s21
          %s183 = ssub.s32 4096, 4096
          %184 = vsyncadd %s176, %s183
          %s185 = smul.addr %s180, 4
          %s186 = sadd.s32 %s181, %s185
          %s187 = smul.addr %s186, 64
          %s188 = scalar_lea.hbm %s0, %s187
          %s189 = sshll.u32 %s179, 4
          %s190 = int_to_ptr.vmem [resolvable:$true] %s189
          %195 = dma.hbm_to_vmem [thread:$0]  %s188, 4096, %s190, %s176, 256, 128, 8
        $region28: #{tpu_custom_call.1} parent=23 // pred_fallthru
          _
        // Predicated region
        $region29: #{tpu_custom_call.1} parent=23 // pred_check
          %p196 = pneg %p73
        $region30: #{tpu_custom_call.1} parent=23 // pred_check_branch
          %198 = sbr.rel (%p196) target = $region32
        $region31: #{tpu_custom_call.1} parent=23 // pred_region
          %s199 = smul.u32 32, %s21
          %p200 = scmp.lt.s32.totalorder %s199, 63
          %s201 = scalar_select %p200, %s199, 63
          %s202 = smul.addr %s201, 8
          %s203 = scalar_lea.vmem %s1, %s202
          %s204 = smul.u32 32, %s21
        $region32: #{tpu_custom_call.1} parent=23 // pred_fallthru
          _
      $region24: #{tpu_custom_call.1} parent=5 // pred_fallthru
        _
      %p205 = scmp.le.s32.totalorder 1, %s13
      %p206 = scmp.lt.s32.totalorder %s13, 5
      %p207 = pnand %p205, %p206
      %p208 = pneg %p207
      // Predicated region
      $region33: #{tpu_custom_call.1} parent=5 // pred_check
        _
      $region34: #{tpu_custom_call.1} parent=5 // pred_check_branch
        %210 = sbr.rel (%p207) target = $region36
      $region35: #{tpu_custom_call.1} parent=5 // pred_region
        %s211 = ssub.s32 %s13, 1
        %s212 = sand.u32 %s40, 1
        %s213 = scalar_lea.sflag [#allocation4], %s212
        %s214 = sand.u32 %s40, 1
        %s215 = smul.addr %s214, 256
        %s216 = scalar_lea.vmem [#allocation3], %s215
        // Predicated region
        $region37: #{tpu_custom_call.1} parent=35 // pred_check
          %p217 = pneg %p53
        $region38: #{tpu_custom_call.1} parent=35 // pred_check_branch
          %219 = sbr.rel (%p217) target = $region40
        $region39: #{tpu_custom_call.1} parent=35 // pred_region
          %220 = dma.done %s213, 4096
        $region40: #{tpu_custom_call.1} parent=35 // pred_fallthru
          _
        %s221 = sand.u32 %s40, 1
        %s222 = scalar_lea.sflag [#allocation4], %s221
        %s223 = sand.u32 %s40, 1
        %s224 = smul.addr %s223, 256
        %s225 = scalar_lea.vmem [#allocation3], %s224
        %p226 = pneg %p53
        %p227 = pneg %p50
        %s228 = smul.u32 32, %s23
        %p229 = scmp.lt.s32.totalorder %s228, 63
        %s230 = scalar_select %p229, %s228, 63
        %s231 = smul.addr %s230, 8
        %s232 = scalar_lea.vmem %s1, %s231
        %p233 = pneg %p79
        %p234 = pneg %p76
        %p235 = pneg %p100
        %p236 = pneg %p97
        %p237 = pneg %p121
        %p238 = pneg %p118
        %p239 = pneg %p147
        %p240 = pneg %p144
        %s241 = smul.u32 32, %s22
        %p242 = scmp.lt.s32.totalorder %s241, 63
        %s243 = scalar_select %p242, %s241, 63
        %s244 = smul.addr %s243, 8
        %s245 = scalar_lea.vmem %s4, %s244
        %s246 = smul.u32 32, %s22
        %s247 = smul.u32 2, %s23
        %s248 = smul.u32 32, %s23
        %p249 = scmp.lt.s32.totalorder %s248, 63
        %s250 = scalar_select %p249, %s248, 63
        %s251 = smul.addr %s250, 8
        %s252 = scalar_lea.vmem %s1, %s251
        %s253 = smul.u32 32, %s23
        %s254 = smul.u32 32, %s22
        %p255 = scmp.lt.s32.totalorder %s254, 63
        %s256 = scalar_select %p255, %s254, 63
        %s257 = smul.addr %s256, 8
        %s258 = scalar_lea.vmem %s4, %s257
        %s259 = smul.u32 32, %s22
        %p261 = scmp.eq.s32.totalorder %s23, 0
        // Predicated region
        $region41: #{tpu_custom_call.1} parent=35 // pred_check
          %p262 = pneg %p261
        $region42: #{tpu_custom_call.1} parent=35 // pred_check_branch
          %264 = sbr.rel (%p262) target = $region44
        $region43: #{tpu_custom_call.1} parent=35 // pred_region
          %vm265 = vcmask 130048
          %266 = vst.msk [vmem:[#allocation2] sm:$0xff] %vm265, 0.0
          %267 = vst.msk [vmem:[#allocation2 + $0x8] sm:$0xff] %vm265, 0.0
          %268 = vst.msk [vmem:[#allocation2 + $0x10] sm:$0xff] %vm265, 0.0
          %269 = vst.msk [vmem:[#allocation2 + $0x18] sm:$0xff] %vm265, 0.0
          %270 = vst.msk [vmem:[#allocation2 + $0x20] sm:$0xff] %vm265, 0.0
          %271 = vst.msk [vmem:[#allocation2 + $0x28] sm:$0xff] %vm265, 0.0
          %272 = vst.msk [vmem:[#allocation2 + $0x30] sm:$0xff] %vm265, 0.0
          %273 = vst.msk [vmem:[#allocation2 + $0x38] sm:$0xff] %vm265, 0.0
          %274 = vst.msk [vmem:[#allocation2 + $0x40] sm:$0xff] %vm265, 0.0
          %275 = vst.msk [vmem:[#allocation2 + $0x48] sm:$0xff] %vm265, 0.0
          %276 = vst.msk [vmem:[#allocation2 + $0x50] sm:$0xff] %vm265, 0.0
          %277 = vst.msk [vmem:[#allocation2 + $0x58] sm:$0xff] %vm265, 0.0
          %278 = vst.msk [vmem:[#allocation2 + $0x60] sm:$0xff] %vm265, 0.0
          %279 = vst.msk [vmem:[#allocation2 + $0x68] sm:$0xff] %vm265, 0.0
          %280 = vst.msk [vmem:[#allocation2 + $0x70] sm:$0xff] %vm265, 0.0
          %281 = vst.msk [vmem:[#allocation2 + $0x78] sm:$0xff] %vm265, 0.0
          %282 = vst.msk [vmem:[#allocation2 + $0x80] sm:$0xff] %vm265, 0.0
          %283 = vst.msk [vmem:[#allocation2 + $0x88] sm:$0xff] %vm265, 0.0
          %284 = vst.msk [vmem:[#allocation2 + $0x90] sm:$0xff] %vm265, 0.0
          %285 = vst.msk [vmem:[#allocation2 + $0x98] sm:$0xff] %vm265, 0.0
          %286 = vst.msk [vmem:[#allocation2 + $0xa0] sm:$0xff] %vm265, 0.0
          %287 = vst.msk [vmem:[#allocation2 + $0xa8] sm:$0xff] %vm265, 0.0
          %288 = vst.msk [vmem:[#allocation2 + $0xb0] sm:$0xff] %vm265, 0.0
          %289 = vst.msk [vmem:[#allocation2 + $0xb8] sm:$0xff] %vm265, 0.0
          %290 = vst.msk [vmem:[#allocation2 + $0xc0] sm:$0xff] %vm265, 0.0
          %291 = vst.msk [vmem:[#allocation2 + $0xc8] sm:$0xff] %vm265, 0.0
          %292 = vst.msk [vmem:[#allocation2 + $0xd0] sm:$0xff] %vm265, 0.0
          %293 = vst.msk [vmem:[#allocation2 + $0xd8] sm:$0xff] %vm265, 0.0
          %294 = vst.msk [vmem:[#allocation2 + $0xe0] sm:$0xff] %vm265, 0.0
          %295 = vst.msk [vmem:[#allocation2 + $0xe8] sm:$0xff] %vm265, 0.0
          %296 = vst.msk [vmem:[#allocation2 + $0xf0] sm:$0xff] %vm265, 0.0
          %297 = vst.msk [vmem:[#allocation2 + $0xf8] sm:$0xff] %vm265, 0.0
        $region44: #{tpu_custom_call.1} parent=35 // pred_fallthru
          _
        %v298 = vld [vmem:[%s252] sm:$0xff]
        %v299 = vld [vmem:[%s252 + $0x8] sm:$0xff]
        %v300 = vld [vmem:[%s252 + $0x10] sm:$0xff]
        %v301 = vld [vmem:[%s252 + $0x18] sm:$0xff]
        %v302 = vld [vmem:[%s252 + $0x20] sm:$0xff]
        %v303 = vld [vmem:[%s252 + $0x28] sm:$0xff]
        %v304 = vld [vmem:[%s252 + $0x30] sm:$0xff]
        %v305 = vld [vmem:[%s252 + $0x38] sm:$0xff]
        %v306 = vld [vmem:[%s252 + $0x40] sm:$0xff]
        %v307 = vld [vmem:[%s252 + $0x48] sm:$0xff]
        %v308 = vld [vmem:[%s252 + $0x50] sm:$0xff]
        %v309 = vld [vmem:[%s252 + $0x58] sm:$0xff]
        %v310 = vld [vmem:[%s252 + $0x60] sm:$0xff]
        %v311 = vld [vmem:[%s252 + $0x68] sm:$0xff]
        %v312 = vld [vmem:[%s252 + $0x70] sm:$0xff]
        %v313 = vld [vmem:[%s252 + $0x78] sm:$0xff]
        %v314 = vld [vmem:[%s252 + $0x80] sm:$0xff]
        %v315 = vld [vmem:[%s252 + $0x88] sm:$0xff]
        %v316 = vld [vmem:[%s252 + $0x90] sm:$0xff]
        %v317 = vld [vmem:[%s252 + $0x98] sm:$0xff]
        %v318 = vld [vmem:[%s252 + $0xa0] sm:$0xff]
        %v319 = vld [vmem:[%s252 + $0xa8] sm:$0xff]
        %v320 = vld [vmem:[%s252 + $0xb0] sm:$0xff]
        %v321 = vld [vmem:[%s252 + $0xb8] sm:$0xff]
        %v322 = vld [vmem:[%s252 + $0xc0] sm:$0xff]
        %v323 = vld [vmem:[%s252 + $0xc8] sm:$0xff]
        %v324 = vld [vmem:[%s252 + $0xd0] sm:$0xff]
        %v325 = vld [vmem:[%s252 + $0xd8] sm:$0xff]
        %v326 = vld [vmem:[%s252 + $0xe0] sm:$0xff]
        %v327 = vld [vmem:[%s252 + $0xe8] sm:$0xff]
        %v328 = vld [vmem:[%s252 + $0xf0] sm:$0xff]
        %v329 = vld [vmem:[%s252 + $0xf8] sm:$0xff]
        %v330 = vpack.c.bf16 %v299, %v298
        %v331 = vpack.c.bf16 %v301, %v300
        %v332 = vpack.c.bf16 %v303, %v302
        %v333 = vpack.c.bf16 %v305, %v304
        %v334 = vpack.c.bf16 %v307, %v306
        %v335 = vpack.c.bf16 %v309, %v308
        %v336 = vpack.c.bf16 %v311, %v310
        %v337 = vpack.c.bf16 %v313, %v312
        %v338 = vpack.c.bf16 %v315, %v314
        %v339 = vpack.c.bf16 %v317, %v316
        %v340 = vpack.c.bf16 %v319, %v318
        %v341 = vpack.c.bf16 %v321, %v320
        %v342 = vpack.c.bf16 %v323, %v322
        %v343 = vpack.c.bf16 %v325, %v324
        %v344 = vpack.c.bf16 %v327, %v326
        %v345 = vpack.c.bf16 %v329, %v328
        %v346 = vld [vmem:[%s2] sm:$0xff]
        %v347 = vpack.c.bf16 %v346, %v346
        %vm348 = vcmask 64512
        %v350 = vsel %vm348, %v330, 0
        %v353 = vsel %vm348, %v331, 0
        %v356 = vsel %vm348, %v332, 0
        %v359 = vsel %vm348, %v333, 0
        %v362 = vsel %vm348, %v334, 0
        %v365 = vsel %vm348, %v335, 0
        %v368 = vsel %vm348, %v336, 0
        %v371 = vsel %vm348, %v337, 0
        %v374 = vsel %vm348, %v338, 0
        %v377 = vsel %vm348, %v339, 0
        %v380 = vsel %vm348, %v340, 0
        %v383 = vsel %vm348, %v341, 0
        %v386 = vsel %vm348, %v342, 0
        %v389 = vsel %vm348, %v343, 0
        %v392 = vsel %vm348, %v344, 0
        %v395 = vsel %vm348, %v345, 0
        %vm397 = vcmask 1043456
        %v399 = vsel %vm397, %v347, 0
        %401 = vmatprep.subr.bf16.mxu0 0
        %402 = vmatpush1.bf16.msra.mxu0 %v399
        %403 = vmatprep.subr.bf16.mxu0 0
        %404 = vmatpush1.bf16.msra.mxu0 0
        %405 = vmatprep.subr.bf16.mxu0 0
        %406 = vmatpush1.bf16.msra.mxu0 0
        %407 = vmatprep.subr.bf16.mxu0 0
        %408 = vmatpush1.bf16.msra.mxu0 0
        %409 = vmatprep.subr.bf16.mxu0 0
        %410 = vmatpush1.bf16.msra.mxu0 0
        %411 = vmatprep.subr.bf16.mxu0 0
        %412 = vmatpush1.bf16.msra.mxu0 0
        %413 = vmatprep.subr.bf16.mxu0 0
        %414 = vmatpush1.bf16.msra.mxu0 0
        %415 = vmatprep.subr.bf16.mxu0 0
        %416 = vmatpush1.bf16.msra.mxu0 0
        %417 = vmatprep.subr.bf16.mxu0 0
        %418 = vmatpush1.bf16.msra.mxu0 0
        %419 = vmatprep.subr.bf16.mxu0 0
        %420 = vmatpush1.bf16.msra.mxu0 0
        %421 = vmatprep.subr.bf16.mxu0 0
        %422 = vmatpush1.bf16.msra.mxu0 0
        %423 = vmatprep.subr.bf16.mxu0 0
        %424 = vmatpush1.bf16.msra.mxu0 0
        %425 = vmatprep.subr.bf16.mxu0 0
        %426 = vmatpush1.bf16.msra.mxu0 0
        %427 = vmatprep.subr.bf16.mxu0 0
        %428 = vmatpush1.bf16.msra.mxu0 0
        %429 = vmatprep.subr.bf16.mxu0 0
        %430 = vmatpush1.bf16.msra.mxu0 0
        %431 = vmatprep.subr.bf16.mxu0 0
        %432 = vmatpush1.bf16.msra.mxu0 0
        %433 = vmatprep.mubr.bf16.mxu0 0
        %434 = vmatmul.mubr.bf16.gmra.mrb[0].mxu0 %v350
        %v435 = vpop.f32.mrb[0].mxu0
        %v436 = vadd.f32 0.0, %v435
        %v437 = vpop.f32.mrb[0].mxu0
        %v438 = vpop.f32.mrb[0].mxu0
        %v439 = vadd.f32 0.0, %v438
        %v440 = vpop.f32.mrb[0].mxu0
        %441 = vmatprep.mubr.bf16.mxu0 0
        %442 = vmatmul.mubr.bf16.gmra.mrb[0].mxu0 %v353
        %v443 = vpop.f32.mrb[0].mxu0
        %v444 = vadd.f32 0.0, %v443
        %v445 = vpop.f32.mrb[0].mxu0
        %v446 = vpop.f32.mrb[0].mxu0
        %v447 = vadd.f32 0.0, %v446
        %v448 = vpop.f32.mrb[0].mxu0
        %449 = vmatprep.mubr.bf16.mxu0 0
        %450 = vmatmul.mubr.bf16.gmra.mrb[0].mxu0 %v356
        %v451 = vpop.f32.mrb[0].mxu0
        %v452 = vadd.f32 0.0, %v451
        %v453 = vpop.f32.mrb[0].mxu0
        %v454 = vpop.f32.mrb[0].mxu0
        %v455 = vadd.f32 0.0, %v454
        %v456 = vpop.f32.mrb[0].mxu0
        %457 = vmatprep.mubr.bf16.mxu0 0
        %458 = vmatmul.mubr.bf16.gmra.mrb[0].mxu0 %v359
        %v459 = vpop.f32.mrb[0].mxu0
        %v460 = vadd.f32 0.0, %v459
        %v461 = vpop.f32.mrb[0].mxu0
        %v462 = vpop.f32.mrb[0].mxu0
        %v463 = vadd.f32 0.0, %v462
        %v464 = vpop.f32.mrb[0].mxu0
        %465 = vmatprep.mubr.bf16.mxu0 0
        %466 = vmatmul.mubr.bf16.gmra.mrb[0].mxu0 %v362
        %v467 = vpop.f32.mrb[0].mxu0
        %v468 = vadd.f32 0.0, %v467
        %v469 = vpop.f32.mrb[0].mxu0
        %v470 = vpop.f32.mrb[0].mxu0
        %v471 = vadd.f32 0.0, %v470
        %v472 = vpop.f32.mrb[0].mxu0
        %473 = vmatprep.mubr.bf16.mxu0 0
        %474 = vmatmul.mubr.bf16.gmra.mrb[0].mxu0 %v365
        %v475 = vpop.f32.mrb[0].mxu0
        %v476 = vadd.f32 0.0, %v475
        %v477 = vpop.f32.mrb[0].mxu0
        %v478 = vpop.f32.mrb[0].mxu0
        %v479 = vadd.f32 0.0, %v478
        %v480 = vpop.f32.mrb[0].mxu0
        %481 = vmatprep.mubr.bf16.mxu0 0
        %482 = vmatmul.mubr.bf16.gmra.mrb[0].mxu0 %v368
        %v483 = vpop.f32.mrb[0].mxu0
        %v484 = vadd.f32 0.0, %v483
        %v485 = vpop.f32.mrb[0].mxu0
        %v486 = vpop.f32.mrb[0].mxu0
        %v487 = vadd.f32 0.0, %v486
        %v488 = vpop.f32.mrb[0].mxu0
        %489 = vmatprep.mubr.bf16.mxu0 0
        %490 = vmatmul.mubr.bf16.gmra.mrb[0].mxu0 %v371
        %v491 = vpop.f32.mrb[0].mxu0
        %v492 = vadd.f32 0.0, %v491
        %v493 = vpop.f32.mrb[0].mxu0
        %v494 = vpop.f32.mrb[0].mxu0
        %v495 = vadd.f32 0.0, %v494
        %v496 = vpop.f32.mrb[0].mxu0
        %497 = vmatprep.mubr.bf16.mxu0 0
        %498 = vmatmul.mubr.bf16.gmra.mrb[0].mxu0 %v374
        %v499 = vpop.f32.mrb[0].mxu0
        %v500 = vadd.f32 0.0, %v499
        %v501 = vpop.f32.mrb[0].mxu0
        %v502 = vpop.f32.mrb[0].mxu0
        %v503 = vadd.f32 0.0, %v502
        %v504 = vpop.f32.mrb[0].mxu0
        %505 = vmatprep.mubr.bf16.mxu0 0
        %506 = vmatmul.mubr.bf16.gmra.mrb[0].mxu0 %v377
        %v507 = vpop.f32.mrb[0].mxu0
        %v508 = vadd.f32 0.0, %v507
        %v509 = vpop.f32.mrb[0].mxu0
        %v510 = vpop.f32.mrb[0].mxu0
        %v511 = vadd.f32 0.0, %v510
        %v512 = vpop.f32.mrb[0].mxu0
        %513 = vmatprep.mubr.bf16.mxu0 0
        %514 = vmatmul.mubr.bf16.gmra.mrb[0].mxu0 %v380
        %v515 = vpop.f32.mrb[0].mxu0
        %v516 = vadd.f32 0.0, %v515
        %v517 = vpop.f32.mrb[0].mxu0
        %v518 = vpop.f32.mrb[0].mxu0
        %v519 = vadd.f32 0.0, %v518
        %v520 = vpop.f32.mrb[0].mxu0
        %521 = vmatprep.mubr.bf16.mxu0 0
        %522 = vmatmul.mubr.bf16.gmra.mrb[0].mxu0 %v383
        %v523 = vpop.f32.mrb[0].mxu0
        %v524 = vadd.f32 0.0, %v523
        %v525 = vpop.f32.mrb[0].mxu0
        %v526 = vpop.f32.mrb[0].mxu0
        %v527 = vadd.f32 0.0, %v526
        %v528 = vpop.f32.mrb[0].mxu0
        %529 = vmatprep.mubr.bf16.mxu0 0
        %530 = vmatmul.mubr.bf16.gmra.mrb[0].mxu0 %v386
        %v531 = vpop.f32.mrb[0].mxu0
        %v532 = vadd.f32 0.0, %v531
        %v533 = vpop.f32.mrb[0].mxu0
        %v534 = vpop.f32.mrb[0].mxu0
        %v535 = vadd.f32 0.0, %v534
        %v536 = vpop.f32.mrb[0].mxu0
        %537 = vmatprep.mubr.bf16.mxu0 0
        %538 = vmatmul.mubr.bf16.gmra.mrb[0].mxu0 %v389
        %v539 = vpop.f32.mrb[0].mxu0
        %v540 = vadd.f32 0.0, %v539
        %v541 = vpop.f32.mrb[0].mxu0
        %v542 = vpop.f32.mrb[0].mxu0
        %v543 = vadd.f32 0.0, %v542
        %v544 = vpop.f32.mrb[0].mxu0
        %545 = vmatprep.mubr.bf16.mxu0 0
        %546 = vmatmul.mubr.bf16.gmra.mrb[0].mxu0 %v392
        %v547 = vpop.f32.mrb[0].mxu0
        %v548 = vadd.f32 0.0, %v547
        %v549 = vpop.f32.mrb[0].mxu0
        %v550 = vpop.f32.mrb[0].mxu0
        %v551 = vadd.f32 0.0, %v550
        %v552 = vpop.f32.mrb[0].mxu0
        %553 = vmatprep.mubr.bf16.mxu0 0
        %554 = vmatmul.mubr.bf16.gmra.mrb[0].mxu0 %v395
        %v555 = vpop.f32.mrb[0].mxu0
        %v556 = vadd.f32 0.0, %v555
        %v557 = vpop.f32.mrb[0].mxu0
        %v558 = vpop.f32.mrb[0].mxu0
        %v559 = vadd.f32 0.0, %v558
        %v560 = vpop.f32.mrb[0].mxu0
        %561 = vdwg.mxu0
        %v562 = vld [vmem:[#allocation2] sm:$0xff]
        %v563 = vld [vmem:[#allocation2 + $0x8] sm:$0xff]
        %v564 = vld [vmem:[#allocation2 + $0x10] sm:$0xff]
        %v565 = vld [vmem:[#allocation2 + $0x18] sm:$0xff]
        %v566 = vld [vmem:[#allocation2 + $0x20] sm:$0xff]
        %v567 = vld [vmem:[#allocation2 + $0x28] sm:$0xff]
        %v568 = vld [vmem:[#allocation2 + $0x30] sm:$0xff]
        %v569 = vld [vmem:[#allocation2 + $0x38] sm:$0xff]
        %v570 = vld [vmem:[#allocation2 + $0x40] sm:$0xff]
        %v571 = vld [vmem:[#allocation2 + $0x48] sm:$0xff]
        %v572 = vld [vmem:[#allocation2 + $0x50] sm:$0xff]
        %v573 = vld [vmem:[#allocation2 + $0x58] sm:$0xff]
        %v574 = vld [vmem:[#allocation2 + $0x60] sm:$0xff]
        %v575 = vld [vmem:[#allocation2 + $0x68] sm:$0xff]
        %v576 = vld [vmem:[#allocation2 + $0x70] sm:$0xff]
        %v577 = vld [vmem:[#allocation2 + $0x78] sm:$0xff]
        %v578 = vld [vmem:[#allocation2 + $0x80] sm:$0xff]
        %v579 = vld [vmem:[#allocation2 + $0x88] sm:$0xff]
        %v580 = vld [vmem:[#allocation2 + $0x90] sm:$0xff]
        %v581 = vld [vmem:[#allocation2 + $0x98] sm:$0xff]
        %v582 = vld [vmem:[#allocation2 + $0xa0] sm:$0xff]
        %v583 = vld [vmem:[#allocation2 + $0xa8] sm:$0xff]
        %v584 = vld [vmem:[#allocation2 + $0xb0] sm:$0xff]
        %v585 = vld [vmem:[#allocation2 + $0xb8] sm:$0xff]
        %v586 = vld [vmem:[#allocation2 + $0xc0] sm:$0xff]
        %v587 = vld [vmem:[#allocation2 + $0xc8] sm:$0xff]
        %v588 = vld [vmem:[#allocation2 + $0xd0] sm:$0xff]
        %v589 = vld [vmem:[#allocation2 + $0xd8] sm:$0xff]
        %v590 = vld [vmem:[#allocation2 + $0xe0] sm:$0xff]
        %v591 = vld [vmem:[#allocation2 + $0xe8] sm:$0xff]
        %v592 = vld [vmem:[#allocation2 + $0xf0] sm:$0xff]
        %v593 = vld [vmem:[#allocation2 + $0xf8] sm:$0xff]
        %v594 = vld [vmem:[%s216] sm:$0xff]
        %v595 = vld [vmem:[%s216 + $0x8] sm:$0xff]
        %v596 = vld [vmem:[%s216 + $0x10] sm:$0xff]
        %v597 = vld [vmem:[%s216 + $0x18] sm:$0xff]
        %v598 = vld [vmem:[%s216 + $0x20] sm:$0xff]
        %v599 = vld [vmem:[%s216 + $0x28] sm:$0xff]
        %v600 = vld [vmem:[%s216 + $0x30] sm:$0xff]
        %v601 = vld [vmem:[%s216 + $0x38] sm:$0xff]
        %v602 = vld [vmem:[%s216 + $0x40] sm:$0xff]
        %v603 = vld [vmem:[%s216 + $0x48] sm:$0xff]
        %v604 = vld [vmem:[%s216 + $0x50] sm:$0xff]
        %v605 = vld [vmem:[%s216 + $0x58] sm:$0xff]
        %v606 = vld [vmem:[%s216 + $0x60] sm:$0xff]
        %v607 = vld [vmem:[%s216 + $0x68] sm:$0xff]
        %v608 = vld [vmem:[%s216 + $0x70] sm:$0xff]
        %v609 = vld [vmem:[%s216 + $0x78] sm:$0xff]
        %v610 = vld [vmem:[%s216 + $0x80] sm:$0xff]
        %v611 = vld [vmem:[%s216 + $0x88] sm:$0xff]
        %v612 = vld [vmem:[%s216 + $0x90] sm:$0xff]
        %v613 = vld [vmem:[%s216 + $0x98] sm:$0xff]
        %v614 = vld [vmem:[%s216 + $0xa0] sm:$0xff]
        %v615 = vld [vmem:[%s216 + $0xa8] sm:$0xff]
        %v616 = vld [vmem:[%s216 + $0xb0] sm:$0xff]
        %v617 = vld [vmem:[%s216 + $0xb8] sm:$0xff]
        %v618 = vld [vmem:[%s216 + $0xc0] sm:$0xff]
        %v619 = vld [vmem:[%s216 + $0xc8] sm:$0xff]
        %v620 = vld [vmem:[%s216 + $0xd0] sm:$0xff]
        %v621 = vld [vmem:[%s216 + $0xd8] sm:$0xff]
        %v622 = vld [vmem:[%s216 + $0xe0] sm:$0xff]
        %v623 = vld [vmem:[%s216 + $0xe8] sm:$0xff]
        %v624 = vld [vmem:[%s216 + $0xf0] sm:$0xff]
        %v625 = vld [vmem:[%s216 + $0xf8] sm:$0xff]
        %v626 = vpack.c.bf16 %v439, %v436
        %v627 = vpack.c.bf16 %v447, %v444
        %v628 = vpack.c.bf16 %v455, %v452
        %v629 = vpack.c.bf16 %v463, %v460
        %v630 = vpack.c.bf16 %v471, %v468
        %v631 = vpack.c.bf16 %v479, %v476
        %v632 = vpack.c.bf16 %v487, %v484
        %v633 = vpack.c.bf16 %v495, %v492
        %v634 = vpack.c.bf16 %v503, %v500
        %v635 = vpack.c.bf16 %v511, %v508
        %v636 = vpack.c.bf16 %v519, %v516
        %v637 = vpack.c.bf16 %v527, %v524
        %v638 = vpack.c.bf16 %v535, %v532
        %v639 = vpack.c.bf16 %v543, %v540
        %v640 = vpack.c.bf16 %v551, %v548
        %v641 = vpack.c.bf16 %v559, %v556
        %v674 = vunpack.c.l.b16 %v594
        %v675 = vunpack.c.h.b16 %v594
        %v676 = vunpack.c.l.b16 %v595
        %v677 = vunpack.c.h.b16 %v595
        %v678 = vunpack.c.l.b16 %v596
        %v679 = vunpack.c.h.b16 %v596
        %v680 = vunpack.c.l.b16 %v597
        %v681 = vunpack.c.h.b16 %v597
        %v682 = vunpack.c.l.b16 %v598
        %v683 = vunpack.c.h.b16 %v598
        %v684 = vunpack.c.l.b16 %v599
        %v685 = vunpack.c.h.b16 %v599
        %v686 = vunpack.c.l.b16 %v600
        %v687 = vunpack.c.h.b16 %v600
        %v688 = vunpack.c.l.b16 %v601
        %v689 = vunpack.c.h.b16 %v601
        %v690 = vunpack.c.l.b16 %v602
        %v691 = vunpack.c.h.b16 %v602
        %v692 = vunpack.c.l.b16 %v603
        %v693 = vunpack.c.h.b16 %v603
        %v694 = vunpack.c.l.b16 %v604
        %v695 = vunpack.c.h.b16 %v604
        %v696 = vunpack.c.l.b16 %v605
        %v697 = vunpack.c.h.b16 %v605
        %v698 = vunpack.c.l.b16 %v606
        %v699 = vunpack.c.h.b16 %v606
        %v700 = vunpack.c.l.b16 %v607
        %v701 = vunpack.c.h.b16 %v607
        %v702 = vunpack.c.l.b16 %v608
        %v703 = vunpack.c.h.b16 %v608
        %v704 = vunpack.c.l.b16 %v609
        %v705 = vunpack.c.h.b16 %v609
        %v706 = vunpack.c.l.b16 %v610
        %v707 = vunpack.c.h.b16 %v610
        %v708 = vunpack.c.l.b16 %v611
        %v709 = vunpack.c.h.b16 %v611
        %v710 = vunpack.c.l.b16 %v612
        %v711 = vunpack.c.h.b16 %v612
        %v712 = vunpack.c.l.b16 %v613
        %v713 = vunpack.c.h.b16 %v613
        %v714 = vunpack.c.l.b16 %v614
        %v715 = vunpack.c.h.b16 %v614
        %v716 = vunpack.c.l.b16 %v615
        %v717 = vunpack.c.h.b16 %v615
        %v718 = vunpack.c.l.b16 %v616
        %v719 = vunpack.c.h.b16 %v616
        %v720 = vunpack.c.l.b16 %v617
        %v721 = vunpack.c.h.b16 %v617
        %v722 = vunpack.c.l.b16 %v618
        %v723 = vunpack.c.h.b16 %v618
        %v724 = vunpack.c.l.b16 %v619
        %v725 = vunpack.c.h.b16 %v619
        %v726 = vunpack.c.l.b16 %v620
        %v727 = vunpack.c.h.b16 %v620
        %v728 = vunpack.c.l.b16 %v621
        %v729 = vunpack.c.h.b16 %v621
        %v730 = vunpack.c.l.b16 %v622
        %v731 = vunpack.c.h.b16 %v622
        %v732 = vunpack.c.l.b16 %v623
        %v733 = vunpack.c.h.b16 %v623
        %v734 = vunpack.c.l.b16 %v624
        %v735 = vunpack.c.h.b16 %v624
        %v736 = vunpack.c.l.b16 %v625
        %v737 = vunpack.c.h.b16 %v625
        %v738 = vpack.c.b16 %v676, %v674
        %v739 = vpack.c.b16 %v677, %v675
        %v740 = vpack.c.b16 %v680, %v678
        %v741 = vpack.c.b16 %v681, %v679
        %v742 = vpack.c.b16 %v684, %v682
        %v743 = vpack.c.b16 %v685, %v683
        %v744 = vpack.c.b16 %v688, %v686
        %v745 = vpack.c.b16 %v689, %v687
        %v746 = vpack.c.b16 %v692, %v690
        %v747 = vpack.c.b16 %v693, %v691
        %v748 = vpack.c.b16 %v696, %v694
        %v749 = vpack.c.b16 %v697, %v695
        %v750 = vpack.c.b16 %v700, %v698
        %v751 = vpack.c.b16 %v701, %v699
        %v752 = vpack.c.b16 %v704, %v702
        %v753 = vpack.c.b16 %v705, %v703
        %v754 = vpack.c.b16 %v708, %v706
        %v755 = vpack.c.b16 %v709, %v707
        %v756 = vpack.c.b16 %v712, %v710
        %v757 = vpack.c.b16 %v713, %v711
        %v758 = vpack.c.b16 %v716, %v714
        %v759 = vpack.c.b16 %v717, %v715
        %v760 = vpack.c.b16 %v720, %v718
        %v761 = vpack.c.b16 %v721, %v719
        %v762 = vpack.c.b16 %v724, %v722
        %v763 = vpack.c.b16 %v725, %v723
        %v764 = vpack.c.b16 %v728, %v726
        %v765 = vpack.c.b16 %v729, %v727
        %v766 = vpack.c.b16 %v732, %v730
        %v767 = vpack.c.b16 %v733, %v731
        %v768 = vpack.c.b16 %v736, %v734
        %v769 = vpack.c.b16 %v737, %v735
        %802 = vmatprep.subr.bf16.mxu0 0
        %803 = vmatpush1.bf16.msra.mxu0 %v626
        %804 = vmatprep.subr.bf16.mxu0 0
        %805 = vmatpush1.bf16.msra.mxu0 %v627
        %806 = vmatprep.subr.bf16.mxu0 0
        %807 = vmatpush1.bf16.msra.mxu0 %v628
        %808 = vmatprep.subr.bf16.mxu0 0
        %809 = vmatpush1.bf16.msra.mxu0 %v629
        %810 = vmatprep.subr.bf16.mxu0 0
        %811 = vmatpush1.bf16.msra.mxu0 %v630
        %812 = vmatprep.subr.bf16.mxu0 0
        %813 = vmatpush1.bf16.msra.mxu0 %v631
        %814 = vmatprep.subr.bf16.mxu0 0
        %815 = vmatpush1.bf16.msra.mxu0 %v632
        %816 = vmatprep.subr.bf16.mxu0 0
        %817 = vmatpush1.bf16.msra.mxu0 %v633
        %818 = vmatprep.subr.bf16.mxu0 0
        %819 = vmatpush1.bf16.msra.mxu0 %v634
        %820 = vmatprep.subr.bf16.mxu0 0
        %821 = vmatpush1.bf16.msra.mxu0 %v635
        %822 = vmatprep.subr.bf16.mxu0 0
        %823 = vmatpush1.bf16.msra.mxu0 %v636
        %824 = vmatprep.subr.bf16.mxu0 0
        %825 = vmatpush1.bf16.msra.mxu0 %v637
        %826 = vmatprep.subr.bf16.mxu0 0
        %827 = vmatpush1.bf16.msra.mxu0 %v638
        %828 = vmatprep.subr.bf16.mxu0 0
        %829 = vmatpush1.bf16.msra.mxu0 %v639
        %830 = vmatprep.subr.bf16.mxu0 0
        %831 = vmatpush1.bf16.msra.mxu0 %v640
        %832 = vmatprep.subr.bf16.mxu0 0
        %833 = vmatpush1.bf16.msra.mxu0 %v641
        %834 = vmatprep.mubr.bf16.mxu0 %v739
        %835 = vmatmul.mubr.bf16.gmra.mrb[0].mxu0 %v738
        %v836 = vpop.f32.mrb[0].mxu0
        %v837 = vadd.f32 0.0, %v836
        %v838 = vpop.f32.mrb[0].mxu0
        %v839 = vpop.f32.mrb[0].mxu0
        %v840 = vadd.f32 0.0, %v839
        %v841 = vpop.f32.mrb[0].mxu0
        %842 = vmatprep.mubr.bf16.mxu0 %v741
        %843 = vmatmul.mubr.bf16.gmra.mrb[0].mxu0 %v740
        %v844 = vpop.f32.mrb[0].mxu0
        %v845 = vadd.f32 0.0, %v844
        %v846 = vpop.f32.mrb[0].mxu0
        %v847 = vpop.f32.mrb[0].mxu0
        %v848 = vadd.f32 0.0, %v847
        %v849 = vpop.f32.mrb[0].mxu0
        %850 = vmatprep.mubr.bf16.mxu0 %v743
        %851 = vmatmul.mubr.bf16.gmra.mrb[0].mxu0 %v742
        %v852 = vpop.f32.mrb[0].mxu0
        %v853 = vadd.f32 0.0, %v852
        %v854 = vpop.f32.mrb[0].mxu0
        %v855 = vpop.f32.mrb[0].mxu0
        %v856 = vadd.f32 0.0, %v855
        %v857 = vpop.f32.mrb[0].mxu0
        %858 = vmatprep.mubr.bf16.mxu0 %v745
        %859 = vmatmul.mubr.bf16.gmra.mrb[0].mxu0 %v744
        %v860 = vpop.f32.mrb[0].mxu0
        %v861 = vadd.f32 0.0, %v860
        %v862 = vpop.f32.mrb[0].mxu0
        %v863 = vpop.f32.mrb[0].mxu0
        %v864 = vadd.f32 0.0, %v863
        %v865 = vpop.f32.mrb[0].mxu0
        %866 = vmatprep.mubr.bf16.mxu0 %v747
        %867 = vmatmul.mubr.bf16.gmra.mrb[0].mxu0 %v746
        %v868 = vpop.f32.mrb[0].mxu0
        %v869 = vadd.f32 0.0, %v868
        %v870 = vpop.f32.mrb[0].mxu0
        %v871 = vpop.f32.mrb[0].mxu0
        %v872 = vadd.f32 0.0, %v871
        %v873 = vpop.f32.mrb[0].mxu0
        %874 = vmatprep.mubr.bf16.mxu0 %v749
        %875 = vmatmul.mubr.bf16.gmra.mrb[0].mxu0 %v748
        %v876 = vpop.f32.mrb[0].mxu0
        %v877 = vadd.f32 0.0, %v876
        %v878 = vpop.f32.mrb[0].mxu0
        %v879 = vpop.f32.mrb[0].mxu0
        %v880 = vadd.f32 0.0, %v879
        %v881 = vpop.f32.mrb[0].mxu0
        %882 = vmatprep.mubr.bf16.mxu0 %v751
        %883 = vmatmul.mubr.bf16.gmra.mrb[0].mxu0 %v750
        %v884 = vpop.f32.mrb[0].mxu0
        %v885 = vadd.f32 0.0, %v884
        %v886 = vpop.f32.mrb[0].mxu0
        %v887 = vpop.f32.mrb[0].mxu0
        %v888 = vadd.f32 0.0, %v887
        %v889 = vpop.f32.mrb[0].mxu0
        %890 = vmatprep.mubr.bf16.mxu0 %v753
        %891 = vmatmul.mubr.bf16.gmra.mrb[0].mxu0 %v752
        %v892 = vpop.f32.mrb[0].mxu0
        %v893 = vadd.f32 0.0, %v892
        %v894 = vpop.f32.mrb[0].mxu0
        %v895 = vpop.f32.mrb[0].mxu0
        %v896 = vadd.f32 0.0, %v895
        %v897 = vpop.f32.mrb[0].mxu0
        %898 = vmatprep.mubr.bf16.mxu0 %v755
        %899 = vmatmul.mubr.bf16.gmra.mrb[0].mxu0 %v754
        %v900 = vpop.f32.mrb[0].mxu0
        %v901 = vadd.f32 0.0, %v900
        %v902 = vpop.f32.mrb[0].mxu0
        %v903 = vpop.f32.mrb[0].mxu0
        %v904 = vadd.f32 0.0, %v903
        %v905 = vpop.f32.mrb[0].mxu0
        %906 = vmatprep.mubr.bf16.mxu0 %v757
        %907 = vmatmul.mubr.bf16.gmra.mrb[0].mxu0 %v756
        %v908 = vpop.f32.mrb[0].mxu0
        %v909 = vadd.f32 0.0, %v908
        %v910 = vpop.f32.mrb[0].mxu0
        %v911 = vpop.f32.mrb[0].mxu0
        %v912 = vadd.f32 0.0, %v911
        %v913 = vpop.f32.mrb[0].mxu0
        %914 = vmatprep.mubr.bf16.mxu0 %v759
        %915 = vmatmul.mubr.bf16.gmra.mrb[0].mxu0 %v758
        %v916 = vpop.f32.mrb[0].mxu0
        %v917 = vadd.f32 0.0, %v916
        %v918 = vpop.f32.mrb[0].mxu0
        %v919 = vpop.f32.mrb[0].mxu0
        %v920 = vadd.f32 0.0, %v919
        %v921 = vpop.f32.mrb[0].mxu0
        %922 = vmatprep.mubr.bf16.mxu0 %v761
        %923 = vmatmul.mubr.bf16.gmra.mrb[0].mxu0 %v760
        %v924 = vpop.f32.mrb[0].mxu0
        %v925 = vadd.f32 0.0, %v924
        %v926 = vpop.f32.mrb[0].mxu0
        %v927 = vpop.f32.mrb[0].mxu0
        %v928 = vadd.f32 0.0, %v927
        %v929 = vpop.f32.mrb[0].mxu0
        %930 = vmatprep.mubr.bf16.mxu0 %v763
        %931 = vmatmul.mubr.bf16.gmra.mrb[0].mxu0 %v762
        %v932 = vpop.f32.mrb[0].mxu0
        %v933 = vadd.f32 0.0, %v932
        %v934 = vpop.f32.mrb[0].mxu0
        %v935 = vpop.f32.mrb[0].mxu0
        %v936 = vadd.f32 0.0, %v935
        %v937 = vpop.f32.mrb[0].mxu0
        %938 = vmatprep.mubr.bf16.mxu0 %v765
        %939 = vmatmul.mubr.bf16.gmra.mrb[0].mxu0 %v764
        %v940 = vpop.f32.mrb[0].mxu0
        %v941 = vadd.f32 0.0, %v940
        %v942 = vpop.f32.mrb[0].mxu0
        %v943 = vpop.f32.mrb[0].mxu0
        %v944 = vadd.f32 0.0, %v943
        %v945 = vpop.f32.mrb[0].mxu0
        %946 = vmatprep.mubr.bf16.mxu0 %v767
        %947 = vmatmul.mubr.bf16.gmra.mrb[0].mxu0 %v766
        %v948 = vpop.f32.mrb[0].mxu0
        %v949 = vadd.f32 0.0, %v948
        %v950 = vpop.f32.mrb[0].mxu0
        %v951 = vpop.f32.mrb[0].mxu0
        %v952 = vadd.f32 0.0, %v951
        %v953 = vpop.f32.mrb[0].mxu0
        %954 = vmatprep.mubr.bf16.mxu0 %v769
        %955 = vmatmul.mubr.bf16.gmra.mrb[0].mxu0 %v768
        %v956 = vpop.f32.mrb[0].mxu0
        %v957 = vadd.f32 0.0, %v956
        %v958 = vpop.f32.mrb[0].mxu0
        %v959 = vpop.f32.mrb[0].mxu0
        %v960 = vadd.f32 0.0, %v959
        %v961 = vpop.f32.mrb[0].mxu0
        %962 = vdwg.mxu0
        %v963 = vadd.f32 %v562, %v837
        %v964 = vadd.f32 %v563, %v840
        %v965 = vadd.f32 %v564, %v845
        %v966 = vadd.f32 %v565, %v848
        %v967 = vadd.f32 %v566, %v853
        %v968 = vadd.f32 %v567, %v856
        %v969 = vadd.f32 %v568, %v861
        %v970 = vadd.f32 %v569, %v864
        %v971 = vadd.f32 %v570, %v869
        %v972 = vadd.f32 %v571, %v872
        %v973 = vadd.f32 %v572, %v877
        %v974 = vadd.f32 %v573, %v880
        %v975 = vadd.f32 %v574, %v885
        %v976 = vadd.f32 %v575, %v888
        %v977 = vadd.f32 %v576, %v893
        %v978 = vadd.f32 %v577, %v896
        %v979 = vadd.f32 %v578, %v901
        %v980 = vadd.f32 %v579, %v904
        %v981 = vadd.f32 %v580, %v909
        %v982 = vadd.f32 %v581, %v912
        %v983 = vadd.f32 %v582, %v917
        %v984 = vadd.f32 %v583, %v920
        %v985 = vadd.f32 %v584, %v925
        %v986 = vadd.f32 %v585, %v928
        %v987 = vadd.f32 %v586, %v933
        %v988 = vadd.f32 %v587, %v936
        %v989 = vadd.f32 %v588, %v941
        %v990 = vadd.f32 %v589, %v944
        %v991 = vadd.f32 %v590, %v949
        %v992 = vadd.f32 %v591, %v952
        %v993 = vadd.f32 %v592, %v957
        %v994 = vadd.f32 %v593, %v960
        %vm995 = vcmask 130048
        %996 = vst.msk [vmem:[#allocation2] sm:$0xff] %vm995, %v963
        %997 = vst.msk [vmem:[#allocation2 + $0x8] sm:$0xff] %vm995, %v964
        %998 = vst.msk [vmem:[#allocation2 + $0x10] sm:$0xff] %vm995, %v965
        %999 = vst.msk [vmem:[#allocation2 + $0x18] sm:$0xff] %vm995, %v966
        %1000 = vst.msk [vmem:[#allocation2 + $0x20] sm:$0xff] %vm995, %v967
        %1001 = vst.msk [vmem:[#allocation2 + $0x28] sm:$0xff] %vm995, %v968
        %1002 = vst.msk [vmem:[#allocation2 + $0x30] sm:$0xff] %vm995, %v969
        %1003 = vst.msk [vmem:[#allocation2 + $0x38] sm:$0xff] %vm995, %v970
        %1004 = vst.msk [vmem:[#allocation2 + $0x40] sm:$0xff] %vm995, %v971
        %1005 = vst.msk [vmem:[#allocation2 + $0x48] sm:$0xff] %vm995, %v972
        %1006 = vst.msk [vmem:[#allocation2 + $0x50] sm:$0xff] %vm995, %v973
        %1007 = vst.msk [vmem:[#allocation2 + $0x58] sm:$0xff] %vm995, %v974
        %1008 = vst.msk [vmem:[#allocation2 + $0x60] sm:$0xff] %vm995, %v975
        %1009 = vst.msk [vmem:[#allocation2 + $0x68] sm:$0xff] %vm995, %v976
        %1010 = vst.msk [vmem:[#allocation2 + $0x70] sm:$0xff] %vm995, %v977
        %1011 = vst.msk [vmem:[#allocation2 + $0x78] sm:$0xff] %vm995, %v978
        %1012 = vst.msk [vmem:[#allocation2 + $0x80] sm:$0xff] %vm995, %v979
        %1013 = vst.msk [vmem:[#allocation2 + $0x88] sm:$0xff] %vm995, %v980
        %1014 = vst.msk [vmem:[#allocation2 + $0x90] sm:$0xff] %vm995, %v981
        %1015 = vst.msk [vmem:[#allocation2 + $0x98] sm:$0xff] %vm995, %v982
        %1016 = vst.msk [vmem:[#allocation2 + $0xa0] sm:$0xff] %vm995, %v983
        %1017 = vst.msk [vmem:[#allocation2 + $0xa8] sm:$0xff] %vm995, %v984
        %1018 = vst.msk [vmem:[#allocation2 + $0xb0] sm:$0xff] %vm995, %v985
        %1019 = vst.msk [vmem:[#allocation2 + $0xb8] sm:$0xff] %vm995, %v986
        %1020 = vst.msk [vmem:[#allocation2 + $0xc0] sm:$0xff] %vm995, %v987
        %1021 = vst.msk [vmem:[#allocation2 + $0xc8] sm:$0xff] %vm995, %v988
        %1022 = vst.msk [vmem:[#allocation2 + $0xd0] sm:$0xff] %vm995, %v989
        %1023 = vst.msk [vmem:[#allocation2 + $0xd8] sm:$0xff] %vm995, %v990
        %1024 = vst.msk [vmem:[#allocation2 + $0xe0] sm:$0xff] %vm995, %v991
        %1025 = vst.msk [vmem:[#allocation2 + $0xe8] sm:$0xff] %vm995, %v992
        %1026 = vst.msk [vmem:[#allocation2 + $0xf0] sm:$0xff] %vm995, %v993
        %1027 = vst.msk [vmem:[#allocation2 + $0xf8] sm:$0xff] %vm995, %v994
        %p1028 = scmp.eq.s32.totalorder %s23, 1
        // Predicated region
        $region45: #{tpu_custom_call.1} parent=35 // pred_check
          %p1029 = pneg %p1028
        $region46: #{tpu_custom_call.1} parent=35 // pred_check_branch
          %1031 = sbr.rel (%p1029) target = $region48
        $region47: #{tpu_custom_call.1} parent=35 // pred_region
          %v1032 = vld [vmem:[#allocation2] sm:$0xff]
          %v1033 = vld [vmem:[#allocation2 + $0x8] sm:$0xff]
          %v1034 = vld [vmem:[#allocation2 + $0x10] sm:$0xff]
          %v1035 = vld [vmem:[#allocation2 + $0x18] sm:$0xff]
          %v1036 = vld [vmem:[#allocation2 + $0x20] sm:$0xff]
          %v1037 = vld [vmem:[#allocation2 + $0x28] sm:$0xff]
          %v1038 = vld [vmem:[#allocation2 + $0x30] sm:$0xff]
          %v1039 = vld [vmem:[#allocation2 + $0x38] sm:$0xff]
          %v1040 = vld [vmem:[#allocation2 + $0x40] sm:$0xff]
          %v1041 = vld [vmem:[#allocation2 + $0x48] sm:$0xff]
          %v1042 = vld [vmem:[#allocation2 + $0x50] sm:$0xff]
          %v1043 = vld [vmem:[#allocation2 + $0x58] sm:$0xff]
          %v1044 = vld [vmem:[#allocation2 + $0x60] sm:$0xff]
          %v1045 = vld [vmem:[#allocation2 + $0x68] sm:$0xff]
          %v1046 = vld [vmem:[#allocation2 + $0x70] sm:$0xff]
          %v1047 = vld [vmem:[#allocation2 + $0x78] sm:$0xff]
          %v1048 = vld [vmem:[#allocation2 + $0x80] sm:$0xff]
          %v1049 = vld [vmem:[#allocation2 + $0x88] sm:$0xff]
          %v1050 = vld [vmem:[#allocation2 + $0x90] sm:$0xff]
          %v1051 = vld [vmem:[#allocation2 + $0x98] sm:$0xff]
          %v1052 = vld [vmem:[#allocation2 + $0xa0] sm:$0xff]
          %v1053 = vld [vmem:[#allocation2 + $0xa8] sm:$0xff]
          %v1054 = vld [vmem:[#allocation2 + $0xb0] sm:$0xff]
          %v1055 = vld [vmem:[#allocation2 + $0xb8] sm:$0xff]
          %v1056 = vld [vmem:[#allocation2 + $0xc0] sm:$0xff]
          %v1057 = vld [vmem:[#allocation2 + $0xc8] sm:$0xff]
          %v1058 = vld [vmem:[#allocation2 + $0xd0] sm:$0xff]
          %v1059 = vld [vmem:[#allocation2 + $0xd8] sm:$0xff]
          %v1060 = vld [vmem:[#allocation2 + $0xe0] sm:$0xff]
          %v1061 = vld [vmem:[#allocation2 + $0xe8] sm:$0xff]
          %v1062 = vld [vmem:[#allocation2 + $0xf0] sm:$0xff]
          %v1063 = vld [vmem:[#allocation2 + $0xf8] sm:$0xff]
          %v1064 = vld [vmem:[%s3] sm:$0x1]
          %v1066 = vlaneseq
          %v1067 = vshrl.u32 %v1066, 7
          %v1068 = vsub.s32 0, %v1067
          %v1069 = vrot.slane %v1064, %v1068
          %v1071 = vadd.f32 %v1032, %v1069
          %v1072 = vadd.f32 %v1033, %v1069
          %v1073 = vadd.f32 %v1034, %v1069
          %v1074 = vadd.f32 %v1035, %v1069
          %v1075 = vadd.f32 %v1036, %v1069
          %v1076 = vadd.f32 %v1037, %v1069
          %v1077 = vadd.f32 %v1038, %v1069
          %v1078 = vadd.f32 %v1039, %v1069
          %v1079 = vadd.f32 %v1040, %v1069
          %v1080 = vadd.f32 %v1041, %v1069
          %v1081 = vadd.f32 %v1042, %v1069
          %v1082 = vadd.f32 %v1043, %v1069
          %v1083 = vadd.f32 %v1044, %v1069
          %v1084 = vadd.f32 %v1045, %v1069
          %v1085 = vadd.f32 %v1046, %v1069
          %v1086 = vadd.f32 %v1047, %v1069
          %v1087 = vadd.f32 %v1048, %v1069
          %v1088 = vadd.f32 %v1049, %v1069
          %v1089 = vadd.f32 %v1050, %v1069
          %v1090 = vadd.f32 %v1051, %v1069
          %v1091 = vadd.f32 %v1052, %v1069
          %v1092 = vadd.f32 %v1053, %v1069
          %v1093 = vadd.f32 %v1054, %v1069
          %v1094 = vadd.f32 %v1055, %v1069
          %v1095 = vadd.f32 %v1056, %v1069
          %v1096 = vadd.f32 %v1057, %v1069
          %v1097 = vadd.f32 %v1058, %v1069
          %v1098 = vadd.f32 %v1059, %v1069
          %v1099 = vadd.f32 %v1060, %v1069
          %v1100 = vadd.f32 %v1061, %v1069
          %v1101 = vadd.f32 %v1062, %v1069
          %v1102 = vadd.f32 %v1063, %v1069
          %v1103 = vmax.f32 %v1071, 0.0
          %v1104 = vmax.f32 %v1072, 0.0
          %v1105 = vmax.f32 %v1073, 0.0
          %v1106 = vmax.f32 %v1074, 0.0
          %v1107 = vmax.f32 %v1075, 0.0
          %v1108 = vmax.f32 %v1076, 0.0
          %v1109 = vmax.f32 %v1077, 0.0
          %v1110 = vmax.f32 %v1078, 0.0
          %v1111 = vmax.f32 %v1079, 0.0
          %v1112 = vmax.f32 %v1080, 0.0
          %v1113 = vmax.f32 %v1081, 0.0
          %v1114 = vmax.f32 %v1082, 0.0
          %v1115 = vmax.f32 %v1083, 0.0
          %v1116 = vmax.f32 %v1084, 0.0
          %v1117 = vmax.f32 %v1085, 0.0
          %v1118 = vmax.f32 %v1086, 0.0
          %v1119 = vmax.f32 %v1087, 0.0
          %v1120 = vmax.f32 %v1088, 0.0
          %v1121 = vmax.f32 %v1089, 0.0
          %v1122 = vmax.f32 %v1090, 0.0
          %v1123 = vmax.f32 %v1091, 0.0
          %v1124 = vmax.f32 %v1092, 0.0
          %v1125 = vmax.f32 %v1093, 0.0
          %v1126 = vmax.f32 %v1094, 0.0
          %v1127 = vmax.f32 %v1095, 0.0
          %v1128 = vmax.f32 %v1096, 0.0
          %v1129 = vmax.f32 %v1097, 0.0
          %v1130 = vmax.f32 %v1098, 0.0
          %v1131 = vmax.f32 %v1099, 0.0
          %v1132 = vmax.f32 %v1100, 0.0
          %v1133 = vmax.f32 %v1101, 0.0
          %v1134 = vmax.f32 %v1102, 0.0
          %1135 = vst.msk [vmem:[%s258] sm:$0xff] %vm995, %v1103
          %1136 = vst.msk [vmem:[%s258 + $0x8] sm:$0xff] %vm995, %v1104
          %1137 = vst.msk [vmem:[%s258 + $0x10] sm:$0xff] %vm995, %v1105
          %1138 = vst.msk [vmem:[%s258 + $0x18] sm:$0xff] %vm995, %v1106
          %1139 = vst.msk [vmem:[%s258 + $0x20] sm:$0xff] %vm995, %v1107
          %1140 = vst.msk [vmem:[%s258 + $0x28] sm:$0xff] %vm995, %v1108
          %1141 = vst.msk [vmem:[%s258 + $0x30] sm:$0xff] %vm995, %v1109
          %1142 = vst.msk [vmem:[%s258 + $0x38] sm:$0xff] %vm995, %v1110
          %1143 = vst.msk [vmem:[%s258 + $0x40] sm:$0xff] %vm995, %v1111
          %1144 = vst.msk [vmem:[%s258 + $0x48] sm:$0xff] %vm995, %v1112
          %1145 = vst.msk [vmem:[%s258 + $0x50] sm:$0xff] %vm995, %v1113
          %1146 = vst.msk [vmem:[%s258 + $0x58] sm:$0xff] %vm995, %v1114
          %1147 = vst.msk [vmem:[%s258 + $0x60] sm:$0xff] %vm995, %v1115
          %1148 = vst.msk [vmem:[%s258 + $0x68] sm:$0xff] %vm995, %v1116
          %1149 = vst.msk [vmem:[%s258 + $0x70] sm:$0xff] %vm995, %v1117
          %1150 = vst.msk [vmem:[%s258 + $0x78] sm:$0xff] %vm995, %v1118
          %1151 = vst.msk [vmem:[%s258 + $0x80] sm:$0xff] %vm995, %v1119
          %1152 = vst.msk [vmem:[%s258 + $0x88] sm:$0xff] %vm995, %v1120
          %1153 = vst.msk [vmem:[%s258 + $0x90] sm:$0xff] %vm995, %v1121
          %1154 = vst.msk [vmem:[%s258 + $0x98] sm:$0xff] %vm995, %v1122
          %1155 = vst.msk [vmem:[%s258 + $0xa0] sm:$0xff] %vm995, %v1123
          %1156 = vst.msk [vmem:[%s258 + $0xa8] sm:$0xff] %vm995, %v1124
          %1157 = vst.msk [vmem:[%s258 + $0xb0] sm:$0xff] %vm995, %v1125
          %1158 = vst.msk [vmem:[%s258 + $0xb8] sm:$0xff] %vm995, %v1126
          %1159 = vst.msk [vmem:[%s258 + $0xc0] sm:$0xff] %vm995, %v1127
          %1160 = vst.msk [vmem:[%s258 + $0xc8] sm:$0xff] %vm995, %v1128
          %1161 = vst.msk [vmem:[%s258 + $0xd0] sm:$0xff] %vm995, %v1129
          %1162 = vst.msk [vmem:[%s258 + $0xd8] sm:$0xff] %vm995, %v1130
          %1163 = vst.msk [vmem:[%s258 + $0xe0] sm:$0xff] %vm995, %v1131
          %1164 = vst.msk [vmem:[%s258 + $0xe8] sm:$0xff] %vm995, %v1132
          %1165 = vst.msk [vmem:[%s258 + $0xf0] sm:$0xff] %vm995, %v1133
          %1166 = vst.msk [vmem:[%s258 + $0xf8] sm:$0xff] %vm995, %v1134
        $region48: #{tpu_custom_call.1} parent=35 // pred_fallthru
          _
        %s1167 = smul.u32 32, %s22
        %p1168 = scmp.lt.s32.totalorder %s1167, 63
        %s1169 = scalar_select %p1168, %s1167, 63
        %s1170 = smul.addr %s1169, 8
        %s1171 = scalar_lea.vmem %s4, %s1170
        // Predicated region
        $region49: #{tpu_custom_call.1} parent=35 // pred_check
          %p1172 = pneg %p144
        $region50: #{tpu_custom_call.1} parent=35 // pred_check_branch
          %1174 = sbr.rel (%p1172) target = $region52
        $region51: #{tpu_custom_call.1} parent=35 // pred_region
          %s1175 = smul.u32 32, %s22
        $region52: #{tpu_custom_call.1} parent=35 // pred_fallthru
          _
      $region36: #{tpu_custom_call.1} parent=5 // pred_fallthru
        _
      %p1176 = scmp.le.s32.totalorder 2, %s13
      // Predicated region
      $region53: #{tpu_custom_call.1} parent=5 // pred_check
        %p1177 = pneg %p1176
      $region54: #{tpu_custom_call.1} parent=5 // pred_check_branch
        %1179 = sbr.rel (%p1177) target = $region56
      $region55: #{tpu_custom_call.1} parent=5 // pred_region
        %s1180 = ssub.s32 %s13, 2
        // Predicated region
        $region57: #{tpu_custom_call.1} parent=55 // pred_check
          %p1181 = pneg %p150
        $region58: #{tpu_custom_call.1} parent=55 // pred_check_branch
          %1183 = sbr.rel (%p1181) target = $region60
        $region59: #{tpu_custom_call.1} parent=55 // pred_region
          %s1184 = smul.u32 32, %s24
          %p1185 = scmp.lt.s32.totalorder %s1184, 63
          %s1186 = scalar_select %p1185, %s1184, 63
          %s1187 = smul.addr %s1186, 8
          %s1188 = scalar_lea.vmem %s4, %s1187
        $region60: #{tpu_custom_call.1} parent=55 // pred_fallthru
          _
      $region56: #{tpu_custom_call.1} parent=5 // pred_fallthru
        _
    $region6: #{tpu_custom_call.1} parent=1 // loop_footer
      %s17 = sadd.s32 1, %s13
    $region7: #{tpu_custom_call.1} parent=1 // loop_footer_branch
      %12 = sbr.rel target = $region3
    $region8: #{tpu_custom_call.1} parent=1 // loop_exit
      _
    %1189 = vsyncpa [#allocation4], 1
    %s1190 = scalar_lea.sflag [#allocation4], 1
    %1191 = vsyncpa %s1190, 1

</llo_original>
